<compile_context>
chip_gen: v7x
topology: tpu7x:2x2x1
jax: 0.10.0
libtpu: 0.0.40
codegen_flags: <defaults>
</compile_context>

<pallas_src>
import functools

import jax
import jax.numpy as jnp
from jax.experimental import pallas as pl
from jax.experimental.pallas import tpu as pltpu


def _head_kernel(x_ref, w1_ref, b1_ref, w2_ref, b2_ref, wp_ref, bp_ref, out_ref,
                 *, hidden):
    """Fused head for one batch tile:
       CLS slice -> dense1 -> relu -> dense2 -> relu -> fused positive-logit-difference
       projection -> sigmoid (== per-head 2-class softmax, positive class)."""
    cdt = w1_ref.dtype                              # matmul dtype (bf16 default, f32 optional)

    # x_ref is either (TB, H) (strided CLS gather) or (TB, S*H) (whole rows); the CLS
    # token always occupies the first `hidden` lanes.  Lane offset 0, width multiple of
    # 128 -> free slice.
    x = x_ref[:, 0:hidden].astype(cdt)              # (TB, H)

    h1 = jnp.dot(x, w1_ref[...], preferred_element_type=jnp.float32) + b1_ref[...]
    h1 = jnp.maximum(h1, 0.0)                       # (TB, 512), f32

    h2 = jnp.dot(h1.astype(cdt), w2_ref[...], preferred_element_type=jnp.float32) + b2_ref[...]
    h2 = jnp.maximum(h2, 0.0)                       # (TB, 256), f32

    # Columns: (hate_logit0 - hate_logit1, fake_logit0 - fake_logit1).
    d = jnp.dot(h2.astype(cdt), wp_ref[...], preferred_element_type=jnp.float32) + bp_ref[...]

    # softmax([a, b])[0] == sigmoid(a - b): pure VPU/EUP elementwise work, no cross-lane
    # reductions and no lane shuffles in the epilogue.
    out_ref[...] = (1.0 / (1.0 + jnp.exp(-d))).astype(out_ref.dtype)    # (TB, 2)


@functools.partial(jax.jit, static_argnames=("batch_tile", "parallel_batch"))
def multitask_head(last_hidden_state, attention_mask, kparams, *,
                   batch_tile=None, parallel_batch=False):
    """Forward pass of MultiTaskHateFakeClassifier (post-backbone part).

    last_hidden_state: (B, S, H) float32 output of the XLM-R backbone
    attention_mask:    (B, S)    int32   (consumed by the backbone only; unused here)
    kparams: dict from prepare_head_params() (bf16 weights by default, f32 biases)
    batch_tile: rows per grid step.  Default None = whole batch in one grid step, which
                is right whenever the head is weight-DMA bound (B up to ~1k).  For very
                large B use >=128 (v5e) / >=256 (v6e/v7x), always a multiple of 8.
    parallel_batch: opt-in 2-TC sharding of the batch axis (v7x).  Off by default because
                each TC would re-DMA the full weight set; only worth it when per-call
                FLOPs exceed the weight-DMA time (B in the thousands).
    returns: (hate_probs (B, 2), fake_probs (B, 2))
    """
    del attention_mask  # only used by the (external) XLM backbone
    B, S, H = last_hidden_state.shape
    TB = B if batch_tile is None else batch_tile
    if TB != B:
        assert B % TB == 0, "batch must be a multiple of batch_tile"
        assert TB % 8 == 0, ("batch_tile < B must be a multiple of 8 so the (TB, ...) "
                             "input/output blocks satisfy the TPU (8, 128) tiling rule")

    # Free (bitcast) reshape: the CLS token of batch row b is the first H columns of
    # flat[b]; no pooled (B, H) intermediate is ever materialized in HBM.
    flat = last_hidden_state.reshape(B, S * H)

    # DMA strategy for the CLS gather (static decision):
    #  - big rows (real XLM-R, H=768): strided gather of just the H CLS lanes per row;
    #  - small rows (<= 8 KiB) or H not lane-aligned: fetch whole contiguous rows and
    #    slice in-kernel (better DMA-segment efficiency on v5e at tiny H).
    row_bytes = S * H * flat.dtype.itemsize
    fetch_full_row = (H % 128 != 0) or (row_bytes <= 8192)
    in_width = S * H if fetch_full_row else H

    w1, b1 = kparams["w1"], kparams["b1"]          # (H, 512),   (1, 512)
    w2, b2 = kparams["w2"], kparams["b2"]          # (512, 256), (1, 256)
    wp, bp = kparams["w_pos"], kparams["b_pos"]    # (256, 2),   (1, 2)   fused hate|fake diff

    # Grid-invariant weight/bias blocks: constant index_map -> DMA'd once per call.
    full = lambda a: pl.BlockSpec(a.shape, lambda i: (0,) * a.ndim)

    grid_spec = pltpu.PrefetchScalarGridSpec(
        num_scalar_prefetch=0,
        grid=(B // TB,),
        in_specs=[
            pl.BlockSpec((TB, in_width), lambda i: (i, 0)),   # CLS tile (gathered in-kernel)
            full(w1), full(b1), full(w2), full(b2), full(wp), full(bp),
        ],
        out_specs=pl.BlockSpec((TB, 2), lambda i: (i, 0)),
    )

    # "arbitrary": a batch-tiled grid stays on one TensorCore, so the full weight set is
    # only fetched once.  parallel_batch=True re-enables megacore sharding for huge B.
    semantics = ("parallel",) if parallel_batch else ("arbitrary",)

    probs_pos = pl.pallas_call(
        functools.partial(_head_kernel, hidden=H),
        out_shape=jax.ShapeDtypeStruct((B, 2), jnp.float32),
        grid_spec=grid_spec,
        compiler_params=pltpu.CompilerParams(dimension_semantics=semantics),
    )(flat, w1, b1, w2, b2, wp, bp)

    # Reconstruct full per-head distributions: [p, 1 - p] (sums to 1 within 1 ulp).
    p_hate = probs_pos[:, 0:1]
    p_fake = probs_pos[:, 1:2]
    hate = jnp.concatenate([p_hate, 1.0 - p_hate], axis=1)
    fake = jnp.concatenate([p_fake, 1.0 - p_fake], axis=1)
    return hate, fake


def _init_params(key, hidden_size):
    """Deterministic synthetic parameters with PyTorch nn.Linear init, in kernel layout:
       weights (in, out), biases (1, out); hate and fake heads kept separate (torch view)."""
    ks = jax.random.split(key, 8)

    def linear(kw, kb, fan_in, fan_out):
        bound = 1.0 / jnp.sqrt(fan_in)
        w = jax.random.uniform(kw, (fan_out, fan_in), jnp.float32, -bound, bound)  # torch layout
        b = jax.random.uniform(kb, (fan_out,), jnp.float32, -bound, bound)
        return w.T, b.reshape(1, fan_out)                  # kernel layout: (in, out), (1, out)

    w1, b1 = linear(ks[0], ks[1], hidden_size, 512)
    w2, b2 = linear(ks[2], ks[3], 512, 256)
    wh, bh = linear(ks[4], ks[5], 256, 2)                  # hate head
    wf, bf = linear(ks[6], ks[7], 256, 2)                  # fake head
    return {"w1": w1, "b1": b1, "w2": w2, "b2": b2,
            "w_hate": wh, "b_hate": bh, "w_fake": wf, "b_fake": bf}


def prepare_head_params(params, weight_dtype=jnp.bfloat16):
    """One-time packing of the head params into kernel form.

    Matmul weights are stored in `weight_dtype` (bf16 by DEFAULT on all generations —
    halves the dominant weight-DMA traffic and avoids multi-pass f32 MXU work on v5e);
    biases stay f32.  The two 2-way heads are folded into a single (256, 2)
    positive-logit-difference projection: softmax([a,b])[0] == sigmoid(a-b) with
    a - b == x @ (w0 - w1) + (b0 - b1).
    Note: the kernel also casts activations (x, h1, h2) to `weight_dtype` for the MXU,
    so the bf16 path trades a little activation precision too (covered by 2e-2 tol)."""
    wd = lambda a: a.astype(weight_dtype)
    w_pos = jnp.concatenate(
        [params["w_hate"][:, 0:1] - params["w_hate"][:, 1:2],
         params["w_fake"][:, 0:1] - params["w_fake"][:, 1:2]], axis=1)   # (256, 2)
    b_pos = jnp.concatenate(
        [params["b_hate"][:, 0:1] - params["b_hate"][:, 1:2],
         params["b_fake"][:, 0:1] - params["b_fake"][:, 1:2]], axis=1)   # (1, 2)
    return {"w1": wd(params["w1"]), "b1": params["b1"].astype(jnp.float32),
            "w2": wd(params["w2"]), "b2": params["b2"].astype(jnp.float32),
            "w_pos": wd(w_pos), "b_pos": b_pos.astype(jnp.float32)}


def _reference(last_hidden_state, params):
    """Pure-JAX f32 reference of the same head (dropout = identity at eval)."""
    x = last_hidden_state[:, 0, :]
    x = jnp.maximum(x @ params["w1"] + params["b1"], 0.0)
    x = jnp.maximum(x @ params["w2"] + params["b2"], 0.0)
    hate = jax.nn.softmax(x @ params["w_hate"] + params["b_hate"], axis=1)
    fake = jax.nn.softmax(x @ params["w_fake"] + params["b_fake"], axis=1)
    return hate, fake


if __name__ == "__main__":
    key = jax.random.PRNGKey(0)
    k_hidden, k_params = jax.random.split(key)

    B, S, H = 16, 8, 128          # small synthetic shapes (hidden_size analog = 128)
    last_hidden_state = jax.random.normal(k_hidden, (B, S, H), jnp.float32)
    attention_mask = jnp.ones((B, S), jnp.int32)
    params = _init_params(k_params, H)

    ref_hate, ref_fake = _reference(last_hidden_state, params)

    # --- default path: bf16 weights (all generations), whole batch in one grid step ----
    kp_bf16 = prepare_head_params(params)                      # bf16 weights by default
    hate, fake = multitask_head(last_hidden_state, attention_mask, kp_bf16)
    hate, fake = jax.block_until_ready((hate, fake))
    assert hate.shape == (B, 2) and fake.shape == (B, 2)
    assert jnp.allclose(hate, ref_hate, atol=2e-2)             # bf16 weights + activations
    assert jnp.allclose(fake, ref_fake, atol=2e-2)
    assert jnp.allclose(jnp.sum(hate, axis=1), 1.0, atol=1e-5)
    assert jnp.allclose(jnp.sum(fake, axis=1), 1.0, atol=1e-5)

    # --- f32-weight path, batch-tiled grid (exercises the TB < B code path) ------------
    kp_f32 = prepare_head_params(params, weight_dtype=jnp.float32)
    hate32, fake32 = multitask_head(last_hidden_state, attention_mask, kp_f32,
                                    batch_tile=8)
    hate32, fake32 = jax.block_until_ready((hate32, fake32))
    assert jnp.allclose(hate32, ref_hate, atol=5e-4, rtol=5e-4)
    assert jnp.allclose(fake32, ref_fake, atol=5e-4, rtol=5e-4)
    assert jnp.allclose(jnp.sum(hate32, axis=1), 1.0, atol=1e-5)
    assert jnp.allclose(jnp.sum(fake32, axis=1), 1.0, atol=1e-5)

    print("KERNEL_OK")
</pallas_src>

<mosaic_0001>
module attributes {stable_mosaic.version = 11 : i64} {
  func.func @_head_kernel(%arg0: i32, %arg1: memref<16x1024xf32, #tpu.memory_space<vmem>>, %arg2: memref<128x512xbf16, #tpu.memory_space<vmem>>, %arg3: memref<1x512xf32, #tpu.memory_space<vmem>>, %arg4: memref<512x256xbf16, #tpu.memory_space<vmem>>, %arg5: memref<1x256xf32, #tpu.memory_space<vmem>>, %arg6: memref<256x2xbf16, #tpu.memory_space<vmem>>, %arg7: memref<1x2xf32, #tpu.memory_space<vmem>>, %arg8: memref<16x2xf32, #tpu.memory_space<vmem>>) attributes {dimension_semantics = [#tpu.dimension_semantics<arbitrary>], iteration_bounds = array<i64: 1>, scalar_prefetch = 0 : i64, scratch_operands = 0 : i64, tpu.core_type = #tpu.core_type<tc>, window_params = [{transform_indices = @transform_0, window_bounds = array<i64: 16, 1024>}, {pipeline_mode = #tpu.pipeline_mode<synchronous>, transform_indices = @transform_1, window_bounds = array<i64: 128, 512>}, {pipeline_mode = #tpu.pipeline_mode<synchronous>, transform_indices = @transform_2, window_bounds = array<i64: 1, 512>}, {pipeline_mode = #tpu.pipeline_mode<synchronous>, transform_indices = @transform_3, window_bounds = array<i64: 512, 256>}, {pipeline_mode = #tpu.pipeline_mode<synchronous>, transform_indices = @transform_4, window_bounds = array<i64: 1, 256>}, {pipeline_mode = #tpu.pipeline_mode<synchronous>, transform_indices = @transform_5, window_bounds = array<i64: 256, 2>}, {pipeline_mode = #tpu.pipeline_mode<synchronous>, transform_indices = @transform_6, window_bounds = array<i64: 1, 2>}, {transform_indices = @transform_7, window_bounds = array<i64: 16, 2>}]} {
    %c0 = arith.constant 0 : index
    %c0_0 = arith.constant 0 : index
    %0 = vector.load %arg1[%c0, %c0_0] : memref<16x1024xf32, #tpu.memory_space<vmem>>, vector<16x128xf32>
    %1 = arith.truncf %0 : vector<16x128xf32> to vector<16x128xbf16>
    %c0_1 = arith.constant 0 : index
    %c0_2 = arith.constant 0 : index
    %2 = vector.load %arg2[%c0_1, %c0_2] : memref<128x512xbf16, #tpu.memory_space<vmem>>, vector<128x512xbf16>
    %cst = arith.constant dense<0.000000e+00> : vector<16x512xf32>
    %3 = tpu.matmul %1, %2, %cst {dimension_numbers = #tpu.dot_dimension_numbers<[1], [0], [0], [1], [0, 0, 1, 1], [], []>} : vector<16x128xbf16>, vector<128x512xbf16>, vector<16x512xf32> -> vector<16x512xf32>
    %c0_3 = arith.constant 0 : index
    %c0_4 = arith.constant 0 : index
    %4 = vector.load %arg3[%c0_3, %c0_4] : memref<1x512xf32, #tpu.memory_space<vmem>>, vector<1x512xf32>
    %5 = vector.broadcast %4 : vector<1x512xf32> to vector<16x512xf32>
    %6 = arith.addf %3, %5 : vector<16x512xf32>
    %cst_5 = arith.constant 0.000000e+00 : f32
    %7 = vector.broadcast %cst_5 : f32 to vector<16x512xf32>
    %8 = arith.maximumf %6, %7 : vector<16x512xf32>
    %9 = arith.truncf %8 : vector<16x512xf32> to vector<16x512xbf16>
    %c0_6 = arith.constant 0 : index
    %c0_7 = arith.constant 0 : index
    %10 = vector.load %arg4[%c0_6, %c0_7] : memref<512x256xbf16, #tpu.memory_space<vmem>>, vector<512x256xbf16>
    %cst_8 = arith.constant dense<0.000000e+00> : vector<16x256xf32>
    %11 = tpu.matmul %9, %10, %cst_8 {dimension_numbers = #tpu.dot_dimension_numbers<[1], [0], [0], [1], [0, 0, 1, 1], [], []>} : vector<16x512xbf16>, vector<512x256xbf16>, vector<16x256xf32> -> vector<16x256xf32>
    %c0_9 = arith.constant 0 : index
    %c0_10 = arith.constant 0 : index
    %12 = vector.load %arg5[%c0_9, %c0_10] : memref<1x256xf32, #tpu.memory_space<vmem>>, vector<1x256xf32>
    %13 = vector.broadcast %12 : vector<1x256xf32> to vector<16x256xf32>
    %14 = arith.addf %11, %13 : vector<16x256xf32>
    %cst_11 = arith.constant 0.000000e+00 : f32
    %15 = vector.broadcast %cst_11 : f32 to vector<16x256xf32>
    %16 = arith.maximumf %14, %15 : vector<16x256xf32>
    %17 = arith.truncf %16 : vector<16x256xf32> to vector<16x256xbf16>
    %c0_12 = arith.constant 0 : index
    %c0_13 = arith.constant 0 : index
    %18 = vector.load %arg6[%c0_12, %c0_13] : memref<256x2xbf16, #tpu.memory_space<vmem>>, vector<256x2xbf16>
    %cst_14 = arith.constant dense<0.000000e+00> : vector<16x2xf32>
    %19 = tpu.matmul %17, %18, %cst_14 {dimension_numbers = #tpu.dot_dimension_numbers<[1], [0], [0], [1], [0, 0, 1, 1], [], []>} : vector<16x256xbf16>, vector<256x2xbf16>, vector<16x2xf32> -> vector<16x2xf32>
    %c0_15 = arith.constant 0 : index
    %c0_16 = arith.constant 0 : index
    %20 = vector.load %arg7[%c0_15, %c0_16] : memref<1x2xf32, #tpu.memory_space<vmem>>, vector<1x2xf32>
    %21 = vector.broadcast %20 : vector<1x2xf32> to vector<16x2xf32>
    %22 = arith.addf %19, %21 : vector<16x2xf32>
    %cst_17 = arith.constant 0.000000e+00 : f32
    %23 = vector.broadcast %cst_17 : f32 to vector<16x2xf32>
    %24 = arith.subf %23, %22 : vector<16x2xf32>
    %25 = math.exp %24 : vector<16x2xf32>
    %cst_18 = arith.constant 1.000000e+00 : f32
    %26 = vector.broadcast %cst_18 : f32 to vector<16x2xf32>
    %27 = arith.addf %26, %25 : vector<16x2xf32>
    %cst_19 = arith.constant 1.000000e+00 : f32
    %28 = vector.broadcast %cst_19 : f32 to vector<16x2xf32>
    %29 = arith.divf %28, %27 : vector<16x2xf32>
    %c0_20 = arith.constant 0 : index
    %c0_21 = arith.constant 0 : index
    %30 = vector.load %arg8[%c0_20, %c0_21] : memref<16x2xf32, #tpu.memory_space<vmem>>, vector<16x2xf32>
    tpu.vector_store %arg8[%c0_20, %c0_21], %29 {strides = array<i32>} : memref<16x2xf32, #tpu.memory_space<vmem>>, vector<16x2xf32>,
    return
  }
  func.func @transform_0(%arg0: i32) -> (i32, i32) {
    %c0_i32 = arith.constant 0 : i32
    %c0_i32_0 = arith.constant 0 : i32
    return %arg0, %c0_i32 : i32, i32
  }
  func.func @transform_1(%arg0: i32) -> (i32, i32) {
    %c0_i32 = arith.constant 0 : i32
    %c0_i32_0 = arith.constant 0 : i32
    %c0_i32_1 = arith.constant 0 : i32
    return %c0_i32, %c0_i32_0 : i32, i32
  }
  func.func @transform_2(%arg0: i32) -> (i32, i32) {
    %c0_i32 = arith.constant 0 : i32
    %c0_i32_0 = arith.constant 0 : i32
    %c0_i32_1 = arith.constant 0 : i32
    return %c0_i32, %c0_i32_0 : i32, i32
  }
  func.func @transform_3(%arg0: i32) -> (i32, i32) {
    %c0_i32 = arith.constant 0 : i32
    %c0_i32_0 = arith.constant 0 : i32
    %c0_i32_1 = arith.constant 0 : i32
    return %c0_i32, %c0_i32_0 : i32, i32
  }
  func.func @transform_4(%arg0: i32) -> (i32, i32) {
    %c0_i32 = arith.constant 0 : i32
    %c0_i32_0 = arith.constant 0 : i32
    %c0_i32_1 = arith.constant 0 : i32
    return %c0_i32, %c0_i32_0 : i32, i32
  }
  func.func @transform_5(%arg0: i32) -> (i32, i32) {
    %c0_i32 = arith.constant 0 : i32
    %c0_i32_0 = arith.constant 0 : i32
    %c0_i32_1 = arith.constant 0 : i32
    return %c0_i32, %c0_i32_0 : i32, i32
  }
  func.func @transform_6(%arg0: i32) -> (i32, i32) {
    %c0_i32 = arith.constant 0 : i32
    %c0_i32_0 = arith.constant 0 : i32
    %c0_i32_1 = arith.constant 0 : i32
    return %c0_i32, %c0_i32_0 : i32, i32
  }
  func.func @transform_7(%arg0: i32) -> (i32, i32) {
    %c0_i32 = arith.constant 0 : i32
    %c0_i32_0 = arith.constant 0 : i32
    return %arg0, %c0_i32 : i32, i32
  }
}

</mosaic_0001>

<llo_original>
// kernel: multitask_head.1
$region0: #{multitask_head.1}
  #allocation0 [shape = 'u32[]', space=smem, size = 0x4, offset = 0x4, fixed_abs, tag = 'smem constant byte address 0x4 - core index']
  #allocation1 [shape = 'u32[144,128]{1,0:T(1,128)}', space=vmem, size = 0x12000, scoped, tag = 'internal scratch']
  %s0 = inlined_call_operand.vmem [shape: f32[16,1024], index: 0, kind: input, shape index: {}]
  %s1 = inlined_call_operand.vmem [shape: bf16[128,512], index: 1, kind: input, shape index: {}]
  %s2 = inlined_call_operand.vmem [shape: f32[1,512], index: 2, kind: input, shape index: {}]
  %s3 = inlined_call_operand.hbm [shape: bf16[512,256], index: 3, kind: input, shape index: {}]
  %s4 = inlined_call_operand.vmem [shape: f32[1,256], index: 4, kind: input, shape index: {}]
  %s5 = inlined_call_operand.vmem [shape: bf16[256,2], index: 5, kind: input, shape index: {}]
  %s6 = inlined_call_operand.vmem [shape: f32[1,2], index: 6, kind: input, shape index: {}]
  %s7 = inlined_call_operand.vmem [shape: f32[16,2], index: 7, kind: output, shape index: {}]
  %s8 = sld [smem:[#allocation0]]
  $region42: #{multitask_head.1} parent=0
    _
  %s10 = ssub.s32 1, %s8
  %s11 = scalar_select 0, %s10, %s8
  $region1: #{multitask_head.1} parent=0
    #allocation2 [shape = 'u8[262144]{0}', space=vmem, size = 0x40000, scoped, tag = 'input window, operand 3, single buffered']
    #allocation3 [shape = 's32[1]{0}', space=sflag, size = 0x4, scoped, tag = 'scoped memory for multitask_head.1']
    %12 = vsyncpa [#allocation3], 0
    // Predicated region
    $region2: #{multitask_head.1} parent=1 // pred_check
      _
    $region3: #{multitask_head.1} parent=1 // pred_check_branch
      %14 = sbr.rel (0) target = $region5
    $region4: #{multitask_head.1} parent=1 // pred_region
      _
    $region5: #{multitask_head.1} parent=1 // pred_fallthru
      _
    // Predicated region
    $region6: #{multitask_head.1} parent=1 // pred_check
      _
    $region7: #{multitask_head.1} parent=1 // pred_check_branch
      %16 = sbr.rel (0) target = $region9
    $region8: #{multitask_head.1} parent=1 // pred_region
      _
    $region9: #{multitask_head.1} parent=1 // pred_fallthru
      _
    // Predicated region
    $region10: #{multitask_head.1} parent=1 // pred_check
      _
    $region11: #{multitask_head.1} parent=1 // pred_check_branch
      %18 = sbr.rel (0) target = $region13
    $region12: #{multitask_head.1} parent=1 // pred_region
      _
    $region13: #{multitask_head.1} parent=1 // pred_fallthru
      _
    // Predicated region
    $region14: #{multitask_head.1} parent=1 // pred_check
      _
    $region15: #{multitask_head.1} parent=1 // pred_check_branch
      %20 = sbr.rel (0) target = $region17
    $region16: #{multitask_head.1} parent=1 // pred_region
      %s22 = ssub.s32 8192, 8192
      %23 = vsyncadd [#allocation3], %s22
      %s24 = sshll.u32 [#allocation2], 4
      %s25 = int_to_ptr.vmem [resolvable:$true] %s24
      %30 = dma.hbm_to_vmem [thread:$0]  %s3, 8192, %s25, [#allocation3], 128, 128, 8
    $region17: #{multitask_head.1} parent=1 // pred_fallthru
      _
    // Predicated region
    $region18: #{multitask_head.1} parent=1 // pred_check
      _
    $region19: #{multitask_head.1} parent=1 // pred_check_branch
      %32 = sbr.rel (0) target = $region21
    $region20: #{multitask_head.1} parent=1 // pred_region
      _
    $region21: #{multitask_head.1} parent=1 // pred_fallthru
      _
    // Predicated region
    $region22: #{multitask_head.1} parent=1 // pred_check
      _
    $region23: #{multitask_head.1} parent=1 // pred_check_branch
      %34 = sbr.rel (0) target = $region25
    $region24: #{multitask_head.1} parent=1 // pred_region
      _
    $region25: #{multitask_head.1} parent=1 // pred_fallthru
      _
    // Predicated region
    $region26: #{multitask_head.1} parent=1 // pred_check
      _
    $region27: #{multitask_head.1} parent=1 // pred_check_branch
      %36 = sbr.rel (0) target = $region29
    $region28: #{multitask_head.1} parent=1 // pred_region
      _
    $region29: #{multitask_head.1} parent=1 // pred_fallthru
      _
    // Predicated region
    $region30: #{multitask_head.1} parent=1 // pred_check
      _
    $region31: #{multitask_head.1} parent=1 // pred_check_branch
      %38 = sbr.rel (0) target = $region33
    $region32: #{multitask_head.1} parent=1 // pred_region
      %39 = dma.done [#allocation3], 8192
    $region33: #{multitask_head.1} parent=1 // pred_fallthru
      _
    %v41 = vld [vmem:[%s0] sm:$0xff]
    %v42 = vld [vmem:[%s0 + $0x40] sm:$0xff]
    %v43 = vpack.c.bf16 %v42, %v41
    %v44 = vld [vmem:[%s1] sm:$0xff]
    %v45 = vld [vmem:[%s1 + $0x8] sm:$0xff]
    %v46 = vld [vmem:[%s1 + $0x10] sm:$0xff]
    %v47 = vld [vmem:[%s1 + $0x18] sm:$0xff]
    %v48 = vld [vmem:[%s1 + $0x20] sm:$0xff]
    %v49 = vld [vmem:[%s1 + $0x28] sm:$0xff]
    %v50 = vld [vmem:[%s1 + $0x30] sm:$0xff]
    %v51 = vld [vmem:[%s1 + $0x38] sm:$0xff]
    %v52 = vld [vmem:[%s1 + $0x40] sm:$0xff]
    %v53 = vld [vmem:[%s1 + $0x48] sm:$0xff]
    %v54 = vld [vmem:[%s1 + $0x50] sm:$0xff]
    %v55 = vld [vmem:[%s1 + $0x58] sm:$0xff]
    %v56 = vld [vmem:[%s1 + $0x60] sm:$0xff]
    %v57 = vld [vmem:[%s1 + $0x68] sm:$0xff]
    %v58 = vld [vmem:[%s1 + $0x70] sm:$0xff]
    %v59 = vld [vmem:[%s1 + $0x78] sm:$0xff]
    %v60 = vld [vmem:[%s1 + $0x80] sm:$0xff]
    %v61 = vld [vmem:[%s1 + $0x88] sm:$0xff]
    %v62 = vld [vmem:[%s1 + $0x90] sm:$0xff]
    %v63 = vld [vmem:[%s1 + $0x98] sm:$0xff]
    %v64 = vld [vmem:[%s1 + $0xa0] sm:$0xff]
    %v65 = vld [vmem:[%s1 + $0xa8] sm:$0xff]
    %v66 = vld [vmem:[%s1 + $0xb0] sm:$0xff]
    %v67 = vld [vmem:[%s1 + $0xb8] sm:$0xff]
    %v68 = vld [vmem:[%s1 + $0xc0] sm:$0xff]
    %v69 = vld [vmem:[%s1 + $0xc8] sm:$0xff]
    %v70 = vld [vmem:[%s1 + $0xd0] sm:$0xff]
    %v71 = vld [vmem:[%s1 + $0xd8] sm:$0xff]
    %v72 = vld [vmem:[%s1 + $0xe0] sm:$0xff]
    %v73 = vld [vmem:[%s1 + $0xe8] sm:$0xff]
    %v74 = vld [vmem:[%s1 + $0xf0] sm:$0xff]
    %v75 = vld [vmem:[%s1 + $0xf8] sm:$0xff]
    %v76 = vld [vmem:[%s2] sm:$0xf]
    %v78 = vlaneseq
    %v79 = vshrl.u32 %v78, 7
    %v80 = vsub.s32 0, %v79
    %v81 = vrot.slane %v76, %v80
    %v82 = vlaneseq
    %v83 = vshrl.u32 %v82, 7
    %v84 = vsub.s32 1, %v83
    %v85 = vrot.slane %v76, %v84
    %v86 = vlaneseq
    %v87 = vshrl.u32 %v86, 7
    %v88 = vsub.s32 2, %v87
    %v89 = vrot.slane %v76, %v88
    %v90 = vlaneseq
    %v91 = vshrl.u32 %v90, 7
    %v92 = vsub.s32 3, %v91
    %v93 = vrot.slane %v76, %v92
    %v130 = vunpack.c.l.b16 %v44
    %v131 = vunpack.c.h.b16 %v44
    %v132 = vunpack.c.l.b16 %v45
    %v133 = vunpack.c.h.b16 %v45
    %v134 = vunpack.c.l.b16 %v46
    %v135 = vunpack.c.h.b16 %v46
    %v136 = vunpack.c.l.b16 %v47
    %v137 = vunpack.c.h.b16 %v47
    %v138 = vunpack.c.l.b16 %v48
    %v139 = vunpack.c.h.b16 %v48
    %v140 = vunpack.c.l.b16 %v49
    %v141 = vunpack.c.h.b16 %v49
    %v142 = vunpack.c.l.b16 %v50
    %v143 = vunpack.c.h.b16 %v50
    %v144 = vunpack.c.l.b16 %v51
    %v145 = vunpack.c.h.b16 %v51
    %v146 = vunpack.c.l.b16 %v52
    %v147 = vunpack.c.h.b16 %v52
    %v148 = vunpack.c.l.b16 %v53
    %v149 = vunpack.c.h.b16 %v53
    %v150 = vunpack.c.l.b16 %v54
    %v151 = vunpack.c.h.b16 %v54
    %v152 = vunpack.c.l.b16 %v55
    %v153 = vunpack.c.h.b16 %v55
    %v154 = vunpack.c.l.b16 %v56
    %v155 = vunpack.c.h.b16 %v56
    %v156 = vunpack.c.l.b16 %v57
    %v157 = vunpack.c.h.b16 %v57
    %v158 = vunpack.c.l.b16 %v58
    %v159 = vunpack.c.h.b16 %v58
    %v160 = vunpack.c.l.b16 %v59
    %v161 = vunpack.c.h.b16 %v59
    %v162 = vunpack.c.l.b16 %v60
    %v163 = vunpack.c.h.b16 %v60
    %v164 = vunpack.c.l.b16 %v61
    %v165 = vunpack.c.h.b16 %v61
    %v166 = vunpack.c.l.b16 %v62
    %v167 = vunpack.c.h.b16 %v62
    %v168 = vunpack.c.l.b16 %v63
    %v169 = vunpack.c.h.b16 %v63
    %v170 = vunpack.c.l.b16 %v64
    %v171 = vunpack.c.h.b16 %v64
    %v172 = vunpack.c.l.b16 %v65
    %v173 = vunpack.c.h.b16 %v65
    %v174 = vunpack.c.l.b16 %v66
    %v175 = vunpack.c.h.b16 %v66
    %v176 = vunpack.c.l.b16 %v67
    %v177 = vunpack.c.h.b16 %v67
    %v178 = vunpack.c.l.b16 %v68
    %v179 = vunpack.c.h.b16 %v68
    %v180 = vunpack.c.l.b16 %v69
    %v181 = vunpack.c.h.b16 %v69
    %v182 = vunpack.c.l.b16 %v70
    %v183 = vunpack.c.h.b16 %v70
    %v184 = vunpack.c.l.b16 %v71
    %v185 = vunpack.c.h.b16 %v71
    %v186 = vunpack.c.l.b16 %v72
    %v187 = vunpack.c.h.b16 %v72
    %v188 = vunpack.c.l.b16 %v73
    %v189 = vunpack.c.h.b16 %v73
    %v190 = vunpack.c.l.b16 %v74
    %v191 = vunpack.c.h.b16 %v74
    %v192 = vunpack.c.l.b16 %v75
    %v193 = vunpack.c.h.b16 %v75
    %v194 = vpack.c.b16 %v134, %v130
    %v195 = vpack.c.b16 %v135, %v131
    %v196 = vpack.c.b16 %v136, %v132
    %v197 = vpack.c.b16 %v137, %v133
    %v198 = vpack.c.b16 %v142, %v138
    %v199 = vpack.c.b16 %v143, %v139
    %v200 = vpack.c.b16 %v144, %v140
    %v201 = vpack.c.b16 %v145, %v141
    %v202 = vpack.c.b16 %v150, %v146
    %v203 = vpack.c.b16 %v151, %v147
    %v204 = vpack.c.b16 %v152, %v148
    %v205 = vpack.c.b16 %v153, %v149
    %v206 = vpack.c.b16 %v158, %v154
    %v207 = vpack.c.b16 %v159, %v155
    %v208 = vpack.c.b16 %v160, %v156
    %v209 = vpack.c.b16 %v161, %v157
    %v210 = vpack.c.b16 %v166, %v162
    %v211 = vpack.c.b16 %v167, %v163
    %v212 = vpack.c.b16 %v168, %v164
    %v213 = vpack.c.b16 %v169, %v165
    %v214 = vpack.c.b16 %v174, %v170
    %v215 = vpack.c.b16 %v175, %v171
    %v216 = vpack.c.b16 %v176, %v172
    %v217 = vpack.c.b16 %v177, %v173
    %v218 = vpack.c.b16 %v182, %v178
    %v219 = vpack.c.b16 %v183, %v179
    %v220 = vpack.c.b16 %v184, %v180
    %v221 = vpack.c.b16 %v185, %v181
    %v222 = vpack.c.b16 %v190, %v186
    %v223 = vpack.c.b16 %v191, %v187
    %v224 = vpack.c.b16 %v192, %v188
    %v225 = vpack.c.b16 %v193, %v189
    %258 = vmatprep.subr.bf16.mxu0 %v195
    %259 = vmatpush1.bf16.msra.mxu0 %v194
    %260 = vmatprep.subr.bf16.mxu0 %v199
    %261 = vmatpush1.bf16.msra.mxu0 %v198
    %262 = vmatprep.subr.bf16.mxu0 %v203
    %263 = vmatpush1.bf16.msra.mxu0 %v202
    %264 = vmatprep.subr.bf16.mxu0 %v207
    %265 = vmatpush1.bf16.msra.mxu0 %v206
    %266 = vmatprep.subr.bf16.mxu0 %v211
    %267 = vmatpush1.bf16.msra.mxu0 %v210
    %268 = vmatprep.subr.bf16.mxu0 %v215
    %269 = vmatpush1.bf16.msra.mxu0 %v214
    %270 = vmatprep.subr.bf16.mxu0 %v219
    %271 = vmatpush1.bf16.msra.mxu0 %v218
    %272 = vmatprep.subr.bf16.mxu0 %v223
    %273 = vmatpush1.bf16.msra.mxu0 %v222
    %274 = vmatprep.subr.bf16.mxu0 0
    %275 = vmatpush1.bf16.msra.mxu0 0
    %276 = vmatprep.subr.bf16.mxu0 0
    %277 = vmatpush1.bf16.msra.mxu0 0
    %278 = vmatprep.subr.bf16.mxu0 0
    %279 = vmatpush1.bf16.msra.mxu0 0
    %280 = vmatprep.subr.bf16.mxu0 0
    %281 = vmatpush1.bf16.msra.mxu0 0
    %282 = vmatprep.subr.bf16.mxu0 0
    %283 = vmatpush1.bf16.msra.mxu0 0
    %284 = vmatprep.subr.bf16.mxu0 0
    %285 = vmatpush1.bf16.msra.mxu0 0
    %286 = vmatprep.subr.bf16.mxu0 0
    %287 = vmatpush1.bf16.msra.mxu0 0
    %288 = vmatprep.subr.bf16.mxu0 0
    %289 = vmatpush1.bf16.msra.mxu0 0
    %290 = vmatprep.mubr.bf16.mxu0 0
    %291 = vmatmul.mubr.bf16.gmra.mrb[0].mxu0 %v43
    %v292 = vpop.f32.mrb[0].mxu0
    %v293 = vadd.f32 %v81, %v292
    %v294 = vpop.f32.mrb[0].mxu0
    %v295 = vadd.f32 %v85, %v294
    %v296 = vpop.f32.mrb[0].mxu0
    %v297 = vadd.f32 %v81, %v296
    %v298 = vpop.f32.mrb[0].mxu0
    %v299 = vadd.f32 %v85, %v298
    %300 = vdwg.mxu0
    %301 = vmatprep.subr.bf16.mxu0 %v197
    %302 = vmatpush1.bf16.msra.mxu0 %v196
    %303 = vmatprep.subr.bf16.mxu0 %v201
    %304 = vmatpush1.bf16.msra.mxu0 %v200
    %305 = vmatprep.subr.bf16.mxu0 %v205
    %306 = vmatpush1.bf16.msra.mxu0 %v204
    %307 = vmatprep.subr.bf16.mxu0 %v209
    %308 = vmatpush1.bf16.msra.mxu0 %v208
    %309 = vmatprep.subr.bf16.mxu0 %v213
    %310 = vmatpush1.bf16.msra.mxu0 %v212
    %311 = vmatprep.subr.bf16.mxu0 %v217
    %312 = vmatpush1.bf16.msra.mxu0 %v216
    %313 = vmatprep.subr.bf16.mxu0 %v221
    %314 = vmatpush1.bf16.msra.mxu0 %v220
    %315 = vmatprep.subr.bf16.mxu0 %v225
    %316 = vmatpush1.bf16.msra.mxu0 %v224
    %317 = vmatprep.subr.bf16.mxu0 0
    %318 = vmatpush1.bf16.msra.mxu0 0
    %319 = vmatprep.subr.bf16.mxu0 0
    %320 = vmatpush1.bf16.msra.mxu0 0
    %321 = vmatprep.subr.bf16.mxu0 0
    %322 = vmatpush1.bf16.msra.mxu0 0
    %323 = vmatprep.subr.bf16.mxu0 0
    %324 = vmatpush1.bf16.msra.mxu0 0
    %325 = vmatprep.subr.bf16.mxu0 0
    %326 = vmatpush1.bf16.msra.mxu0 0
    %327 = vmatprep.subr.bf16.mxu0 0
    %328 = vmatpush1.bf16.msra.mxu0 0
    %329 = vmatprep.subr.bf16.mxu0 0
    %330 = vmatpush1.bf16.msra.mxu0 0
    %331 = vmatprep.subr.bf16.mxu0 0
    %332 = vmatpush1.bf16.msra.mxu0 0
    %333 = vmatprep.mubr.bf16.mxu0 0
    %334 = vmatmul.mubr.bf16.gmra.mrb[0].mxu0 %v43
    %v335 = vpop.f32.mrb[0].mxu0
    %v336 = vadd.f32 %v89, %v335
    %v337 = vpop.f32.mrb[0].mxu0
    %v338 = vadd.f32 %v93, %v337
    %v339 = vpop.f32.mrb[0].mxu0
    %v340 = vadd.f32 %v89, %v339
    %v341 = vpop.f32.mrb[0].mxu0
    %v342 = vadd.f32 %v93, %v341
    %343 = vdwg.mxu0
    %v344 = vmax.f32 %v293, 0.0
    %v345 = vmax.f32 %v295, 0.0
    %v346 = vmax.f32 %v336, 0.0
    %v347 = vmax.f32 %v338, 0.0
    %v348 = vmax.f32 %v297, 0.0
    %v349 = vmax.f32 %v299, 0.0
    %v350 = vmax.f32 %v340, 0.0
    %v351 = vmax.f32 %v342, 0.0
    %v352 = vpack.c.bf16 %v348, %v344
    %v353 = vpack.c.bf16 %v349, %v345
    %v354 = vpack.c.bf16 %v350, %v346
    %v355 = vpack.c.bf16 %v351, %v347
    %v356 = vld [vmem:[#allocation2] sm:$0xff]
    %v357 = vld [vmem:[#allocation2 + $0x8] sm:$0xff]
    %v358 = vld [vmem:[#allocation2 + $0x10] sm:$0xff]
    %v359 = vld [vmem:[#allocation2 + $0x18] sm:$0xff]
    %v360 = vld [vmem:[#allocation2 + $0x20] sm:$0xff]
    %v361 = vld [vmem:[#allocation2 + $0x28] sm:$0xff]
    %v362 = vld [vmem:[#allocation2 + $0x30] sm:$0xff]
    %v363 = vld [vmem:[#allocation2 + $0x38] sm:$0xff]
    %v364 = vld [vmem:[#allocation2 + $0x40] sm:$0xff]
    %v365 = vld [vmem:[#allocation2 + $0x48] sm:$0xff]
    %v366 = vld [vmem:[#allocation2 + $0x50] sm:$0xff]
    %v367 = vld [vmem:[#allocation2 + $0x58] sm:$0xff]
    %v368 = vld [vmem:[#allocation2 + $0x60] sm:$0xff]
    %v369 = vld [vmem:[#allocation2 + $0x68] sm:$0xff]
    %v370 = vld [vmem:[#allocation2 + $0x70] sm:$0xff]
    %v371 = vld [vmem:[#allocation2 + $0x78] sm:$0xff]
    %v372 = vld [vmem:[#allocation2 + $0x80] sm:$0xff]
    %v373 = vld [vmem:[#allocation2 + $0x88] sm:$0xff]
    %v374 = vld [vmem:[#allocation2 + $0x90] sm:$0xff]
    %v375 = vld [vmem:[#allocation2 + $0x98] sm:$0xff]
    %v376 = vld [vmem:[#allocation2 + $0xa0] sm:$0xff]
    %v377 = vld [vmem:[#allocation2 + $0xa8] sm:$0xff]
    %v378 = vld [vmem:[#allocation2 + $0xb0] sm:$0xff]
    %v379 = vld [vmem:[#allocation2 + $0xb8] sm:$0xff]
    %v380 = vld [vmem:[#allocation2 + $0xc0] sm:$0xff]
    %v381 = vld [vmem:[#allocation2 + $0xc8] sm:$0xff]
    %v382 = vld [vmem:[#allocation2 + $0xd0] sm:$0xff]
    %v383 = vld [vmem:[#allocation2 + $0xd8] sm:$0xff]
    %v384 = vld [vmem:[#allocation2 + $0xe0] sm:$0xff]
    %v385 = vld [vmem:[#allocation2 + $0xe8] sm:$0xff]
    %v386 = vld [vmem:[#allocation2 + $0xf0] sm:$0xff]
    %v387 = vld [vmem:[#allocation2 + $0xf8] sm:$0xff]
    %v388 = vld [vmem:[#allocation2 + $0x100] sm:$0xff]
    %v389 = vld [vmem:[#allocation2 + $0x108] sm:$0xff]
    %v390 = vld [vmem:[#allocation2 + $0x110] sm:$0xff]
    %v391 = vld [vmem:[#allocation2 + $0x118] sm:$0xff]
    %v392 = vld [vmem:[#allocation2 + $0x120] sm:$0xff]
    %v393 = vld [vmem:[#allocation2 + $0x128] sm:$0xff]
    %v394 = vld [vmem:[#allocation2 + $0x130] sm:$0xff]
    %v395 = vld [vmem:[#allocation2 + $0x138] sm:$0xff]
    %v396 = vld [vmem:[#allocation2 + $0x140] sm:$0xff]
    %v397 = vld [vmem:[#allocation2 + $0x148] sm:$0xff]
    %v398 = vld [vmem:[#allocation2 + $0x150] sm:$0xff]
    %v399 = vld [vmem:[#allocation2 + $0x158] sm:$0xff]
    %v400 = vld [vmem:[#allocation2 + $0x160] sm:$0xff]
    %v401 = vld [vmem:[#allocation2 + $0x168] sm:$0xff]
    %v402 = vld [vmem:[#allocation2 + $0x170] sm:$0xff]
    %v403 = vld [vmem:[#allocation2 + $0x178] sm:$0xff]
    %v404 = vld [vmem:[#allocation2 + $0x180] sm:$0xff]
    %v405 = vld [vmem:[#allocation2 + $0x188] sm:$0xff]
    %v406 = vld [vmem:[#allocation2 + $0x190] sm:$0xff]
    %v407 = vld [vmem:[#allocation2 + $0x198] sm:$0xff]
    %v408 = vld [vmem:[#allocation2 + $0x1a0] sm:$0xff]
    %v409 = vld [vmem:[#allocation2 + $0x1a8] sm:$0xff]
    %v410 = vld [vmem:[#allocation2 + $0x1b0] sm:$0xff]
    %v411 = vld [vmem:[#allocation2 + $0x1b8] sm:$0xff]
    %v412 = vld [vmem:[#allocation2 + $0x1c0] sm:$0xff]
    %v413 = vld [vmem:[#allocation2 + $0x1c8] sm:$0xff]
    %v414 = vld [vmem:[#allocation2 + $0x1d0] sm:$0xff]
    %v415 = vld [vmem:[#allocation2 + $0x1d8] sm:$0xff]
    %v416 = vld [vmem:[#allocation2 + $0x1e0] sm:$0xff]
    %v417 = vld [vmem:[#allocation2 + $0x1e8] sm:$0xff]
    %v418 = vld [vmem:[#allocation2 + $0x1f0] sm:$0xff]
    %v419 = vld [vmem:[#allocation2 + $0x1f8] sm:$0xff]
    %v420 = vld [vmem:[%s4] sm:$0x3]
    %v422 = vlaneseq
    %v423 = vshrl.u32 %v422, 7
    %v424 = vsub.s32 0, %v423
    %v425 = vrot.slane %v420, %v424
    %v426 = vlaneseq
    %v427 = vshrl.u32 %v426, 7
    %v428 = vsub.s32 1, %v427
    %v429 = vrot.slane %v420, %v428
    %v496 = vunpack.c.l.b16 %v356
    %v497 = vunpack.c.h.b16 %v356
    %v498 = vunpack.c.l.b16 %v357
    %v499 = vunpack.c.h.b16 %v357
    %v500 = vunpack.c.l.b16 %v358
    %v501 = vunpack.c.h.b16 %v358
    %v502 = vunpack.c.l.b16 %v359
    %v503 = vunpack.c.h.b16 %v359
    %v504 = vunpack.c.l.b16 %v360
    %v505 = vunpack.c.h.b16 %v360
    %v506 = vunpack.c.l.b16 %v361
    %v507 = vunpack.c.h.b16 %v361
    %v508 = vunpack.c.l.b16 %v362
    %v509 = vunpack.c.h.b16 %v362
    %v510 = vunpack.c.l.b16 %v363
    %v511 = vunpack.c.h.b16 %v363
    %v512 = vunpack.c.l.b16 %v364
    %v513 = vunpack.c.h.b16 %v364
    %v514 = vunpack.c.l.b16 %v365
    %v515 = vunpack.c.h.b16 %v365
    %v516 = vunpack.c.l.b16 %v366
    %v517 = vunpack.c.h.b16 %v366
    %v518 = vunpack.c.l.b16 %v367
    %v519 = vunpack.c.h.b16 %v367
    %v520 = vunpack.c.l.b16 %v368
    %v521 = vunpack.c.h.b16 %v368
    %v522 = vunpack.c.l.b16 %v369
    %v523 = vunpack.c.h.b16 %v369
    %v524 = vunpack.c.l.b16 %v370
    %v525 = vunpack.c.h.b16 %v370
    %v526 = vunpack.c.l.b16 %v371
    %v527 = vunpack.c.h.b16 %v371
    %v528 = vunpack.c.l.b16 %v372
    %v529 = vunpack.c.h.b16 %v372
    %v530 = vunpack.c.l.b16 %v373
    %v531 = vunpack.c.h.b16 %v373
    %v532 = vunpack.c.l.b16 %v374
    %v533 = vunpack.c.h.b16 %v374
    %v534 = vunpack.c.l.b16 %v375
    %v535 = vunpack.c.h.b16 %v375
    %v536 = vunpack.c.l.b16 %v376
    %v537 = vunpack.c.h.b16 %v376
    %v538 = vunpack.c.l.b16 %v377
    %v539 = vunpack.c.h.b16 %v377
    %v540 = vunpack.c.l.b16 %v378
    %v541 = vunpack.c.h.b16 %v378
    %v542 = vunpack.c.l.b16 %v379
    %v543 = vunpack.c.h.b16 %v379
    %v544 = vunpack.c.l.b16 %v380
    %v545 = vunpack.c.h.b16 %v380
    %v546 = vunpack.c.l.b16 %v381
    %v547 = vunpack.c.h.b16 %v381
    %v548 = vunpack.c.l.b16 %v382
    %v549 = vunpack.c.h.b16 %v382
    %v550 = vunpack.c.l.b16 %v383
    %v551 = vunpack.c.h.b16 %v383
    %v552 = vunpack.c.l.b16 %v384
    %v553 = vunpack.c.h.b16 %v384
    %v554 = vunpack.c.l.b16 %v385
    %v555 = vunpack.c.h.b16 %v385
    %v556 = vunpack.c.l.b16 %v386
    %v557 = vunpack.c.h.b16 %v386
    %v558 = vunpack.c.l.b16 %v387
    %v559 = vunpack.c.h.b16 %v387
    %v560 = vunpack.c.l.b16 %v388
    %v561 = vunpack.c.h.b16 %v388
    %v562 = vunpack.c.l.b16 %v389
    %v563 = vunpack.c.h.b16 %v389
    %v564 = vunpack.c.l.b16 %v390
    %v565 = vunpack.c.h.b16 %v390
    %v566 = vunpack.c.l.b16 %v391
    %v567 = vunpack.c.h.b16 %v391
    %v568 = vunpack.c.l.b16 %v392
    %v569 = vunpack.c.h.b16 %v392
    %v570 = vunpack.c.l.b16 %v393
    %v571 = vunpack.c.h.b16 %v393
    %v572 = vunpack.c.l.b16 %v394
    %v573 = vunpack.c.h.b16 %v394
    %v574 = vunpack.c.l.b16 %v395
    %v575 = vunpack.c.h.b16 %v395
    %v576 = vunpack.c.l.b16 %v396
    %v577 = vunpack.c.h.b16 %v396
    %v578 = vunpack.c.l.b16 %v397
    %v579 = vunpack.c.h.b16 %v397
    %v580 = vunpack.c.l.b16 %v398
    %v581 = vunpack.c.h.b16 %v398
    %v582 = vunpack.c.l.b16 %v399
    %v583 = vunpack.c.h.b16 %v399
    %v584 = vunpack.c.l.b16 %v400
    %v585 = vunpack.c.h.b16 %v400
    %v586 = vunpack.c.l.b16 %v401
    %v587 = vunpack.c.h.b16 %v401
    %v588 = vunpack.c.l.b16 %v402
    %v589 = vunpack.c.h.b16 %v402
    %v590 = vunpack.c.l.b16 %v403
    %v591 = vunpack.c.h.b16 %v403
    %v592 = vunpack.c.l.b16 %v404
    %v593 = vunpack.c.h.b16 %v404
    %v594 = vunpack.c.l.b16 %v405
    %v595 = vunpack.c.h.b16 %v405
    %v596 = vunpack.c.l.b16 %v406
    %v597 = vunpack.c.h.b16 %v406
    %v598 = vunpack.c.l.b16 %v407
    %v599 = vunpack.c.h.b16 %v407
    %v600 = vunpack.c.l.b16 %v408
    %v601 = vunpack.c.h.b16 %v408
    %v602 = vunpack.c.l.b16 %v409
    %v603 = vunpack.c.h.b16 %v409
    %v604 = vunpack.c.l.b16 %v410
    %v605 = vunpack.c.h.b16 %v410
    %v606 = vunpack.c.l.b16 %v411
    %v607 = vunpack.c.h.b16 %v411
    %v608 = vunpack.c.l.b16 %v412
    %v609 = vunpack.c.h.b16 %v412
    %v610 = vunpack.c.l.b16 %v413
    %v611 = vunpack.c.h.b16 %v413
    %v612 = vunpack.c.l.b16 %v414
    %v613 = vunpack.c.h.b16 %v414
    %v614 = vunpack.c.l.b16 %v415
    %v615 = vunpack.c.h.b16 %v415
    %v616 = vunpack.c.l.b16 %v416
    %v617 = vunpack.c.h.b16 %v416
    %v618 = vunpack.c.l.b16 %v417
    %v619 = vunpack.c.h.b16 %v417
    %v620 = vunpack.c.l.b16 %v418
    %v621 = vunpack.c.h.b16 %v418
    %v622 = vunpack.c.l.b16 %v419
    %v623 = vunpack.c.h.b16 %v419
    %v624 = vpack.c.b16 %v498, %v496
    %v625 = vpack.c.b16 %v499, %v497
    %v626 = vpack.c.b16 %v502, %v500
    %v627 = vpack.c.b16 %v503, %v501
    %v628 = vpack.c.b16 %v506, %v504
    %v629 = vpack.c.b16 %v507, %v505
    %v630 = vpack.c.b16 %v510, %v508
    %v631 = vpack.c.b16 %v511, %v509
    %v632 = vpack.c.b16 %v514, %v512
    %v633 = vpack.c.b16 %v515, %v513
    %v634 = vpack.c.b16 %v518, %v516
    %v635 = vpack.c.b16 %v519, %v517
    %v636 = vpack.c.b16 %v522, %v520
    %v637 = vpack.c.b16 %v523, %v521
    %v638 = vpack.c.b16 %v526, %v524
    %v639 = vpack.c.b16 %v527, %v525
    %v640 = vpack.c.b16 %v530, %v528
    %v641 = vpack.c.b16 %v531, %v529
    %v642 = vpack.c.b16 %v534, %v532
    %v643 = vpack.c.b16 %v535, %v533
    %v644 = vpack.c.b16 %v538, %v536
    %v645 = vpack.c.b16 %v539, %v537
    %v646 = vpack.c.b16 %v542, %v540
    %v647 = vpack.c.b16 %v543, %v541
    %v648 = vpack.c.b16 %v546, %v544
    %v649 = vpack.c.b16 %v547, %v545
    %v650 = vpack.c.b16 %v550, %v548
    %v651 = vpack.c.b16 %v551, %v549
    %v652 = vpack.c.b16 %v554, %v552
    %v653 = vpack.c.b16 %v555, %v553
    %v654 = vpack.c.b16 %v558, %v556
    %v655 = vpack.c.b16 %v559, %v557
    %v656 = vpack.c.b16 %v562, %v560
    %v657 = vpack.c.b16 %v563, %v561
    %v658 = vpack.c.b16 %v566, %v564
    %v659 = vpack.c.b16 %v567, %v565
    %v660 = vpack.c.b16 %v570, %v568
    %v661 = vpack.c.b16 %v571, %v569
    %v662 = vpack.c.b16 %v574, %v572
    %v663 = vpack.c.b16 %v575, %v573
    %v664 = vpack.c.b16 %v578, %v576
    %v665 = vpack.c.b16 %v579, %v577
    %v666 = vpack.c.b16 %v582, %v580
    %v667 = vpack.c.b16 %v583, %v581
    %v668 = vpack.c.b16 %v586, %v584
    %v669 = vpack.c.b16 %v587, %v585
    %v670 = vpack.c.b16 %v590, %v588
    %v671 = vpack.c.b16 %v591, %v589
    %v672 = vpack.c.b16 %v594, %v592
    %v673 = vpack.c.b16 %v595, %v593
    %v674 = vpack.c.b16 %v598, %v596
    %v675 = vpack.c.b16 %v599, %v597
    %v676 = vpack.c.b16 %v602, %v600
    %v677 = vpack.c.b16 %v603, %v601
    %v678 = vpack.c.b16 %v606, %v604
    %v679 = vpack.c.b16 %v607, %v605
    %v680 = vpack.c.b16 %v610, %v608
    %v681 = vpack.c.b16 %v611, %v609
    %v682 = vpack.c.b16 %v614, %v612
    %v683 = vpack.c.b16 %v615, %v613
    %v684 = vpack.c.b16 %v618, %v616
    %v685 = vpack.c.b16 %v619, %v617
    %v686 = vpack.c.b16 %v622, %v620
    %v687 = vpack.c.b16 %v623, %v621
    %752 = vmatprep.subr.bf16.mxu0 %v625
    %753 = vmatpush1.bf16.msra.mxu0 %v624
    %754 = vmatprep.subr.bf16.mxu0 %v627
    %755 = vmatpush1.bf16.msra.mxu0 %v626
    %756 = vmatprep.subr.bf16.mxu0 %v629
    %757 = vmatpush1.bf16.msra.mxu0 %v628
    %758 = vmatprep.subr.bf16.mxu0 %v631
    %759 = vmatpush1.bf16.msra.mxu0 %v630
    %760 = vmatprep.subr.bf16.mxu0 %v633
    %761 = vmatpush1.bf16.msra.mxu0 %v632
    %762 = vmatprep.subr.bf16.mxu0 %v635
    %763 = vmatpush1.bf16.msra.mxu0 %v634
    %764 = vmatprep.subr.bf16.mxu0 %v637
    %765 = vmatpush1.bf16.msra.mxu0 %v636
    %766 = vmatprep.subr.bf16.mxu0 %v639
    %767 = vmatpush1.bf16.msra.mxu0 %v638
    %768 = vmatprep.subr.bf16.mxu0 %v641
    %769 = vmatpush1.bf16.msra.mxu0 %v640
    %770 = vmatprep.subr.bf16.mxu0 %v643
    %771 = vmatpush1.bf16.msra.mxu0 %v642
    %772 = vmatprep.subr.bf16.mxu0 %v645
    %773 = vmatpush1.bf16.msra.mxu0 %v644
    %774 = vmatprep.subr.bf16.mxu0 %v647
    %775 = vmatpush1.bf16.msra.mxu0 %v646
    %776 = vmatprep.subr.bf16.mxu0 %v649
    %777 = vmatpush1.bf16.msra.mxu0 %v648
    %778 = vmatprep.subr.bf16.mxu0 %v651
    %779 = vmatpush1.bf16.msra.mxu0 %v650
    %780 = vmatprep.subr.bf16.mxu0 %v653
    %781 = vmatpush1.bf16.msra.mxu0 %v652
    %782 = vmatprep.subr.bf16.mxu0 %v655
    %783 = vmatpush1.bf16.msra.mxu0 %v654
    %784 = vmatprep.mubr.bf16.mxu0 %v353
    %785 = vmatmul.mubr.bf16.gmra.mrb[0].mxu0 %v352
    %v786 = vpop.f32.mrb[0].mxu0
    %v787 = vadd.f32 %v425, %v786
    %v788 = vpop.f32.mrb[0].mxu0
    %v789 = vadd.f32 %v429, %v788
    %v790 = vpop.f32.mrb[0].mxu0
    %v791 = vadd.f32 %v425, %v790
    %v792 = vpop.f32.mrb[0].mxu0
    %v793 = vadd.f32 %v429, %v792
    %794 = vdwg.mxu0
    %795 = vmatprep.subr.bf16.mxu0 %v657
    %796 = vmatpush1.bf16.msra.mxu0 %v656
    %797 = vmatprep.subr.bf16.mxu0 %v659
    %798 = vmatpush1.bf16.msra.mxu0 %v658
    %799 = vmatprep.subr.bf16.mxu0 %v661
    %800 = vmatpush1.bf16.msra.mxu0 %v660
    %801 = vmatprep.subr.bf16.mxu0 %v663
    %802 = vmatpush1.bf16.msra.mxu0 %v662
    %803 = vmatprep.subr.bf16.mxu0 %v665
    %804 = vmatpush1.bf16.msra.mxu0 %v664
    %805 = vmatprep.subr.bf16.mxu0 %v667
    %806 = vmatpush1.bf16.msra.mxu0 %v666
    %807 = vmatprep.subr.bf16.mxu0 %v669
    %808 = vmatpush1.bf16.msra.mxu0 %v668
    %809 = vmatprep.subr.bf16.mxu0 %v671
    %810 = vmatpush1.bf16.msra.mxu0 %v670
    %811 = vmatprep.subr.bf16.mxu0 %v673
    %812 = vmatpush1.bf16.msra.mxu0 %v672
    %813 = vmatprep.subr.bf16.mxu0 %v675
    %814 = vmatpush1.bf16.msra.mxu0 %v674
    %815 = vmatprep.subr.bf16.mxu0 %v677
    %816 = vmatpush1.bf16.msra.mxu0 %v676
    %817 = vmatprep.subr.bf16.mxu0 %v679
    %818 = vmatpush1.bf16.msra.mxu0 %v678
    %819 = vmatprep.subr.bf16.mxu0 %v681
    %820 = vmatpush1.bf16.msra.mxu0 %v680
    %821 = vmatprep.subr.bf16.mxu0 %v683
    %822 = vmatpush1.bf16.msra.mxu0 %v682
    %823 = vmatprep.subr.bf16.mxu0 %v685
    %824 = vmatpush1.bf16.msra.mxu0 %v684
    %825 = vmatprep.subr.bf16.mxu0 %v687
    %826 = vmatpush1.bf16.msra.mxu0 %v686
    %827 = vmatprep.mubr.bf16.mxu0 %v355
    %828 = vmatmul.mubr.bf16.gmra.mrb[0].mxu0 %v354
    %v829 = vpop.f32.mrb[0].mxu0
    %v830 = vadd.f32 %v787, %v829
    %v831 = vpop.f32.mrb[0].mxu0
    %v832 = vadd.f32 %v789, %v831
    %v833 = vpop.f32.mrb[0].mxu0
    %v834 = vadd.f32 %v791, %v833
    %v835 = vpop.f32.mrb[0].mxu0
    %v836 = vadd.f32 %v793, %v835
    %837 = vdwg.mxu0
    %v838 = vmax.f32 %v830, 0.0
    %v839 = vmax.f32 %v832, 0.0
    %v840 = vmax.f32 %v834, 0.0
    %v841 = vmax.f32 %v836, 0.0
    %v842 = vpack.c.bf16 %v840, %v838
    %v843 = vpack.c.bf16 %v841, %v839
    %v844 = vld [vmem:[%s5] sm:$0xf]
    %v845 = vld [vmem:[%s5 + $0x4] sm:$0xf]
    %v846 = vld [vmem:[%s5 + $0x8] sm:$0xf]
    %v847 = vld [vmem:[%s5 + $0xc] sm:$0xf]
    %v848 = vld [vmem:[%s5 + $0x10] sm:$0xf]
    %v849 = vld [vmem:[%s5 + $0x14] sm:$0xf]
    %v850 = vld [vmem:[%s5 + $0x18] sm:$0xf]
    %v851 = vld [vmem:[%s5 + $0x1c] sm:$0xf]
    %v852 = vld [vmem:[%s5 + $0x20] sm:$0xf]
    %v853 = vld [vmem:[%s5 + $0x24] sm:$0xf]
    %v854 = vld [vmem:[%s5 + $0x28] sm:$0xf]
    %v855 = vld [vmem:[%s5 + $0x2c] sm:$0xf]
    %v856 = vld [vmem:[%s5 + $0x30] sm:$0xf]
    %v857 = vld [vmem:[%s5 + $0x34] sm:$0xf]
    %v858 = vld [vmem:[%s5 + $0x38] sm:$0xf]
    %v859 = vld [vmem:[%s5 + $0x3c] sm:$0xf]
    %v860 = vld [vmem:[%s5 + $0x40] sm:$0xf]
    %v861 = vld [vmem:[%s5 + $0x44] sm:$0xf]
    %v862 = vld [vmem:[%s5 + $0x48] sm:$0xf]
    %v863 = vld [vmem:[%s5 + $0x4c] sm:$0xf]
    %v864 = vld [vmem:[%s5 + $0x50] sm:$0xf]
    %v865 = vld [vmem:[%s5 + $0x54] sm:$0xf]
    %v866 = vld [vmem:[%s5 + $0x58] sm:$0xf]
    %v867 = vld [vmem:[%s5 + $0x5c] sm:$0xf]
    %v868 = vld [vmem:[%s5 + $0x60] sm:$0xf]
    %v869 = vld [vmem:[%s5 + $0x64] sm:$0xf]
    %v870 = vld [vmem:[%s5 + $0x68] sm:$0xf]
    %v871 = vld [vmem:[%s5 + $0x6c] sm:$0xf]
    %v872 = vld [vmem:[%s5 + $0x70] sm:$0xf]
    %v873 = vld [vmem:[%s5 + $0x74] sm:$0xf]
    %v874 = vld [vmem:[%s5 + $0x78] sm:$0xf]
    %v875 = vld [vmem:[%s5 + $0x7c] sm:$0xf]
    %v876 = vld [vmem:[%s6] sm:$0x1]
    %v878 = vlaneseq
    %v879 = vshrl.u32 %v878, 7
    %v880 = vsub.s32 0, %v879
    %v881 = vrot.slane %v876, %v880
    %v915 = vunpack.c.l.b16 %v844
    %v916 = vunpack.c.l.b16 %v845
    %v917 = vunpack.c.l.b16 %v846
    %v918 = vunpack.c.l.b16 %v847
    %v919 = vunpack.c.l.b16 %v848
    %v920 = vunpack.c.l.b16 %v849
    %v921 = vunpack.c.l.b16 %v850
    %v922 = vunpack.c.l.b16 %v851
    %v923 = vunpack.c.l.b16 %v852
    %v924 = vunpack.c.l.b16 %v853
    %v925 = vunpack.c.l.b16 %v854
    %v926 = vunpack.c.l.b16 %v855
    %v927 = vunpack.c.l.b16 %v856
    %v928 = vunpack.c.l.b16 %v857
    %v929 = vunpack.c.l.b16 %v858
    %v930 = vunpack.c.l.b16 %v859
    %v931 = vunpack.c.l.b16 %v860
    %v932 = vunpack.c.l.b16 %v861
    %v933 = vunpack.c.l.b16 %v862
    %v934 = vunpack.c.l.b16 %v863
    %v935 = vunpack.c.l.b16 %v864
    %v936 = vunpack.c.l.b16 %v865
    %v937 = vunpack.c.l.b16 %v866
    %v938 = vunpack.c.l.b16 %v867
    %v939 = vunpack.c.l.b16 %v868
    %v940 = vunpack.c.l.b16 %v869
    %v941 = vunpack.c.l.b16 %v870
    %v942 = vunpack.c.l.b16 %v871
    %v943 = vunpack.c.l.b16 %v872
    %v944 = vunpack.c.l.b16 %v873
    %v945 = vunpack.c.l.b16 %v874
    %v946 = vunpack.c.l.b16 %v875
    %v947 = vpack.c.b16 %v916, %v915
    %v948 = vpack.c.b16 %v918, %v917
    %v949 = vpack.c.b16 %v920, %v919
    %v950 = vpack.c.b16 %v922, %v921
    %v951 = vpack.c.b16 %v924, %v923
    %v952 = vpack.c.b16 %v926, %v925
    %v953 = vpack.c.b16 %v928, %v927
    %v954 = vpack.c.b16 %v930, %v929
    %v955 = vpack.c.b16 %v932, %v931
    %v956 = vpack.c.b16 %v934, %v933
    %v957 = vpack.c.b16 %v936, %v935
    %v958 = vpack.c.b16 %v938, %v937
    %v959 = vpack.c.b16 %v940, %v939
    %v960 = vpack.c.b16 %v942, %v941
    %v961 = vpack.c.b16 %v944, %v943
    %v962 = vpack.c.b16 %v946, %v945
    %979 = vmatprep.subr.bf16.mxu0 0
    %980 = vmatpush1.bf16.msra.mxu0 %v947
    %981 = vmatprep.subr.bf16.mxu0 0
    %982 = vmatpush1.bf16.msra.mxu0 %v948
    %983 = vmatprep.subr.bf16.mxu0 0
    %984 = vmatpush1.bf16.msra.mxu0 %v949
    %985 = vmatprep.subr.bf16.mxu0 0
    %986 = vmatpush1.bf16.msra.mxu0 %v950
    %987 = vmatprep.subr.bf16.mxu0 0
    %988 = vmatpush1.bf16.msra.mxu0 %v951
    %989 = vmatprep.subr.bf16.mxu0 0
    %990 = vmatpush1.bf16.msra.mxu0 %v952
    %991 = vmatprep.subr.bf16.mxu0 0
    %992 = vmatpush1.bf16.msra.mxu0 %v953
    %993 = vmatprep.subr.bf16.mxu0 0
    %994 = vmatpush1.bf16.msra.mxu0 %v954
    %995 = vmatprep.subr.bf16.mxu0 0
    %996 = vmatpush1.bf16.msra.mxu0 %v955
    %997 = vmatprep.subr.bf16.mxu0 0
    %998 = vmatpush1.bf16.msra.mxu0 %v956
    %999 = vmatprep.subr.bf16.mxu0 0
    %1000 = vmatpush1.bf16.msra.mxu0 %v957
    %1001 = vmatprep.subr.bf16.mxu0 0
    %1002 = vmatpush1.bf16.msra.mxu0 %v958
    %1003 = vmatprep.subr.bf16.mxu0 0
    %1004 = vmatpush1.bf16.msra.mxu0 %v959
    %1005 = vmatprep.subr.bf16.mxu0 0
    %1006 = vmatpush1.bf16.msra.mxu0 %v960
    %1007 = vmatprep.subr.bf16.mxu0 0
    %1008 = vmatpush1.bf16.msra.mxu0 %v961
    %1009 = vmatprep.subr.bf16.mxu0 0
    %1010 = vmatpush1.bf16.msra.mxu0 %v962
    %1011 = vmatprep.mubr.bf16.mxu0 %v843
    %1012 = vmatmul.mubr.bf16.gmra.mrb[0].mxu0 %v842
    %v1013 = vpop.f32.mrb[0].mxu0
    %v1014 = vadd.f32 %v881, %v1013
    %v1015 = vpop.f32.mrb[0].mxu0
    %v1016 = vpop.f32.mrb[0].mxu0
    %v1017 = vadd.f32 %v881, %v1016
    %v1018 = vpop.f32.mrb[0].mxu0
    %1019 = vdwg.mxu0
    %v1020 = vsub.f32 0.0, %v1014
    %v1021 = vsub.f32 0.0, %v1017
    %v1022 = vmul.f32 %v1020, 1.442695
    %v1023 = vpow.pop %v1022
    %v1024 = vmul.f32 %v1021, 1.442695
    %v1025 = vpow.pop %v1024
    %v1026 = vadd.f32 %v1023, 1.0
    %v1027 = vadd.f32 %v1025, 1.0
    %v1028 = vrcp.pop %v1026
    %v1029 = vmul.f32 1.0, %v1028
    %v1030 = vrcp.pop %v1027
    %v1031 = vmul.f32 1.0, %v1030
    %vm1032 = vcmask 15360
    %1033 = vst.msk [vmem:[%s7] sm:$0xff] %vm1032, %v1029
    %1034 = vst.msk [vmem:[%s7 + $0x8] sm:$0xff] %vm1032, %v1031
    // Predicated region
    $region34: #{multitask_head.1} parent=1 // pred_check
      _
    $region35: #{multitask_head.1} parent=1 // pred_check_branch
      %1036 = sbr.rel (0) target = $region37
    $region36: #{multitask_head.1} parent=1 // pred_region
      _
    $region37: #{multitask_head.1} parent=1 // pred_fallthru
      _
    // Predicated region
    $region38: #{multitask_head.1} parent=1 // pred_check
      _
    $region39: #{multitask_head.1} parent=1 // pred_check_branch
      %1038 = sbr.rel (0) target = $region41
    $region40: #{multitask_head.1} parent=1 // pred_region
      _
    $region41: #{multitask_head.1} parent=1 // pred_fallthru
      _
    %1039 = vsyncpa [#allocation3], 1

</llo_original>
